<compile_context>
chip_gen: v7x
topology: tpu7x:2x2x1
jax: 0.10.0
libtpu: 0.0.40
codegen_flags: <defaults>
</compile_context>

<pallas_src>
import functools

import jax
import jax.numpy as jnp
from jax.experimental import pallas as pl
from jax.experimental.pallas import tpu as pltpu

_LANE = 128


def _round_up(x, m):
    return (x + m - 1) // m * m


def _label_smooth_ce_kernel(logits_ref, targets_ref, loss_ref, *,
                            epsilon, num_classes, batch, tile_b, n_inner):
    # logits_ref: (TB, Kp) float,  targets_ref: (TB, 1) int32
    # loss_ref:   (1, 1, 1) f32 resident output block for this parallel slice.
    p = pl.program_id(0)   # parallel slice (megacore)
    i = pl.program_id(1)   # reduction step within the slice

    @pl.when(i == 0)
    def _init():
        loss_ref[...] = jnp.zeros_like(loss_ref)

    x = logits_ref[...].astype(jnp.float32)                       # (TB, Kp)
    tb, kp = x.shape

    # (1, Kp) class-index iota; broadcasts against (TB, 1) targets below.
    cls_idx = jax.lax.broadcasted_iota(jnp.int32, (1, kp), 1)

    # Rows added by batch padding (partial last tiles) contribute nothing.
    row0 = (p * n_inner + i) * tile_b
    row_idx = row0 + jax.lax.broadcasted_iota(jnp.int32, (tb, 1), 0)
    row_valid = (row_idx < batch).astype(jnp.float32)             # (TB, 1)

    if num_classes == kp:
        # No class padding: skip the lane masks entirely.
        x_lse = x
        base_w = jnp.float32(epsilon / num_classes)
    else:
        # Mask padded class lanes out of the lse and out of the weights.
        lane_valid = cls_idx < num_classes                        # (1, Kp)
        x_lse = jnp.where(lane_valid, x, jnp.float32(-1e30))
        base_w = jnp.where(lane_valid,
                           jnp.float32(epsilon / num_classes),
                           jnp.float32(0.0))                      # (1, Kp)

    # Numerically stable per-row log-sum-exp.
    m = jnp.max(x_lse, axis=1, keepdims=True)                     # (TB, 1)
    lse = m + jnp.log(jnp.sum(jnp.exp(x_lse - m), axis=1, keepdims=True))

    # Single weighted reduce (folds the target gather and sum over classes):
    #   loss_b = lse_b - sum_k x[b,k] * (eps/K + (1-eps)*[k == t_b])
    is_t = (cls_idx == targets_ref[...]).astype(jnp.float32)      # (TB, Kp)
    w = base_w + (1.0 - epsilon) * is_t
    wx = jnp.sum(x * w, axis=1, keepdims=True)                    # (TB, 1)

    per_row = lse - wx                                            # (TB, 1)
    # Accumulate per-tile means (divide by the true global B here) directly
    # into the resident output block.
    partial = (jnp.sum(per_row * row_valid, keepdims=True)
               * jnp.float32(1.0 / batch))                        # (1, 1)
    loss_ref[...] += partial.reshape(1, 1, 1)


def _choose_tile_b(batch, kp, itemsize, sub):
    """Bytes-based batch tile: target ~2 MiB of logits per block, capped so
    double-buffered inputs + f32 temporaries stay <= ~20 MiB (v7x-safe)."""
    target_block_bytes = 2 << 20
    budget_bytes = 20 << 20
    per_row_in = kp * itemsize
    per_row_f32 = kp * 4
    tb = max(1, target_block_bytes // per_row_in)
    tb = min(tb, max(1, budget_bytes // (2 * per_row_in + 3 * per_row_f32)))
    tb = max(sub, (tb // sub) * sub)
    tb = min(tb, _round_up(batch, sub))
    return int(tb)


def cross_entropy_label_smooth(logits, targets, *, num_classes, epsilon=0.1,
                               tile_b=None):
    """JAX wrapper mirroring CrossEntropyLabelSmooth.forward.

    Args:
      logits:  (B, K) pre-softmax scores (f32 or bf16; bf16 halves HBM traffic).
      targets: (B,)   int class indices.
      tile_b:  optional batch-tile override; auto-sized by bytes if None.
    Returns:
      scalar float32 loss.
    """
    B, K = logits.shape
    assert K == num_classes
    itemsize = jnp.dtype(logits.dtype).itemsize
    sub = 16 if itemsize == 2 else 8   # sublane multiple (bf16 packs 2x)

    # Pad the class axis to a lane multiple; padded lanes are masked in-kernel.
    kp = _round_up(K, _LANE)
    if kp != K:
        logits = jnp.pad(logits, ((0, 0), (0, kp - K)))

    if tile_b is None:
        tb = _choose_tile_b(B, kp, itemsize, sub)
    else:
        tb = min(_round_up(int(tile_b), sub), _round_up(B, sub))

    # Megacore split: two parallel slices when there is more than one tile
    # (uses both TensorCores on v7x; harmless sequential no-op on v5e/v6e).
    n_tiles = pl.cdiv(B, tb)
    n_par = 2 if n_tiles >= 2 else 1
    n_inner = pl.cdiv(n_tiles, n_par)
    b_pad = n_par * n_inner * tb

    if b_pad != B:
        logits = jnp.pad(logits, ((0, b_pad - B), (0, 0)))
        targets = jnp.pad(targets, (0, b_pad - B))
    targets_2d = targets.astype(jnp.int32).reshape(b_pad, 1)

    kernel = functools.partial(
        _label_smooth_ce_kernel,
        epsilon=float(epsilon),
        num_classes=int(num_classes),
        batch=int(B),
        tile_b=int(tb),
        n_inner=int(n_inner),
    )

    # Generation-aware VMEM budget: footprint is capped <= ~20 MiB by tile
    # sizing; raise the scoped limit (v5e default is only 16 MiB) while
    # leaving headroom on v7x's 64 MiB physical VMEM.
    footprint = 2 * tb * kp * itemsize + 4 * tb * kp * 4 + 2 * tb * _LANE * 4
    vmem_limit = int(min(48 << 20, max(16 << 20, 2 * footprint)))

    partials = pl.pallas_call(
        kernel,
        grid=(n_par, n_inner),
        out_shape=jax.ShapeDtypeStruct((n_par, 1, 1), jnp.float32),
        in_specs=[
            pl.BlockSpec((tb, kp), lambda p, i: (p * n_inner + i, 0)),
            pl.BlockSpec((tb, 1), lambda p, i: (p * n_inner + i, 0)),
        ],
        out_specs=pl.BlockSpec((1, 1, 1), lambda p, i: (p, 0, 0)),
        compiler_params=pltpu.CompilerParams(
            dimension_semantics=("parallel", "arbitrary"),
            vmem_limit_bytes=vmem_limit,
        ),
    )(logits, targets_2d)
    return jnp.sum(partials)


def _reference(logits, targets, *, num_classes, epsilon=0.1):
    log_probs = jax.nn.log_softmax(logits.astype(jnp.float32), axis=1)
    one_hot = jax.nn.one_hot(targets, num_classes, dtype=jnp.float32)
    smooth = (1.0 - epsilon) * one_hot + epsilon / num_classes
    return jnp.sum(jnp.mean(-smooth * log_probs, axis=0))


if __name__ == "__main__":
    epsilon = 0.1
    key = jax.random.PRNGKey(0)
    k1, k2, k3, k4, k5, k6 = jax.random.split(key, 6)

    # Small config matching the module (single tile, K padded 16 -> 128).
    B, K = 8, 16
    logits = jax.random.normal(k1, (B, K), dtype=jnp.float32)
    targets = jax.random.randint(k2, (B,), 0, K, dtype=jnp.int32)
    loss = cross_entropy_label_smooth(logits, targets, num_classes=K, epsilon=epsilon)
    loss = jax.block_until_ready(loss)
    ref = _reference(logits, targets, num_classes=K, epsilon=epsilon)
    assert jnp.allclose(loss, ref, rtol=1e-5, atol=1e-5), (loss, ref)

    # Exercise the 2-D (parallel, arbitrary) grid + masked partial last tile:
    # tile override 16 -> n_par=2, n_inner=4, rows 100..127 padded & masked.
    B2, K2 = 100, 128
    logits2 = jax.random.normal(k3, (B2, K2), dtype=jnp.float32)
    targets2 = jax.random.randint(k4, (B2,), 0, K2, dtype=jnp.int32)
    loss2 = cross_entropy_label_smooth(logits2, targets2, num_classes=K2,
                                       epsilon=epsilon, tile_b=16)
    loss2 = jax.block_until_ready(loss2)
    ref2 = _reference(logits2, targets2, num_classes=K2, epsilon=epsilon)
    assert jnp.allclose(loss2, ref2, rtol=1e-5, atol=1e-5), (loss2, ref2)

    # bf16 inputs + K not a multiple of 128 (lane-padding mask path).
    B3, K3 = 64, 200
    logits3 = jax.random.normal(k5, (B3, K3), dtype=jnp.bfloat16)
    targets3 = jax.random.randint(k6, (B3,), 0, K3, dtype=jnp.int32)
    loss3 = cross_entropy_label_smooth(logits3, targets3, num_classes=K3,
                                       epsilon=epsilon)
    loss3 = jax.block_until_ready(loss3)
    ref3 = _reference(logits3, targets3, num_classes=K3, epsilon=epsilon)
    assert jnp.allclose(loss3, ref3, rtol=1e-4, atol=1e-5), (loss3, ref3)

    print("KERNEL_OK")
</pallas_src>

<mosaic_0001>
module attributes {stable_mosaic.version = 11 : i64} {
  func.func @_label_smooth_ce_kernel(%arg0: i32, %arg1: i32, %arg2: memref<8x128xf32, #tpu.memory_space<vmem>>, %arg3: memref<8x1xi32, #tpu.memory_space<vmem>>, %arg4: memref<1x1x1xf32, #tpu.memory_space<vmem>>) attributes {dimension_semantics = [#tpu.dimension_semantics<parallel>, #tpu.dimension_semantics<arbitrary>], iteration_bounds = array<i64: 1, 1>, scalar_prefetch = 0 : i64, scratch_operands = 0 : i64, tpu.core_type = #tpu.core_type<tc>, window_params = [{transform_indices = @transform_0, window_bounds = array<i64: 8, 128>}, {transform_indices = @transform_1, window_bounds = array<i64: 8, 1>}, {transform_indices = @transform_2, window_bounds = array<i64: 1, 1, 1>}]} {
    %c0_i32 = arith.constant 0 : i32
    %0 = arith.cmpi eq, %arg1, %c0_i32 : i32
    %1 = arith.extui %0 : i1 to i32
    %c0_i32_0 = arith.constant 0 : i32
    %2 = arith.cmpi ne, %1, %c0_i32_0 : i32
    scf.if %2 {
      %cst_19 = arith.constant 0.000000e+00 : f32
      %59 = vector.broadcast %cst_19 : f32 to vector<1x1x1xf32>
      %c0_20 = arith.constant 0 : index
      %c0_21 = arith.constant 0 : index
      %c0_22 = arith.constant 0 : index
      %60 = vector.load %arg4[%c0_20, %c0_21, %c0_22] : memref<1x1x1xf32, #tpu.memory_space<vmem>>, vector<1x1x1xf32>
      tpu.vector_store %arg4[%c0_20, %c0_21, %c0_22], %59 {strides = array<i32>} : memref<1x1x1xf32, #tpu.memory_space<vmem>>, vector<1x1x1xf32>,
    } else {
    }
    %c0 = arith.constant 0 : index
    %c0_1 = arith.constant 0 : index
    %3 = vector.load %arg2[%c0, %c0_1] : memref<8x128xf32, #tpu.memory_space<vmem>>, vector<8x128xf32>
    %4 = tpu.iota {dimensions = array<i32: 1>} : vector<1x128xi32>
    %c1_i32 = arith.constant 1 : i32
    %5 = arith.muli %arg0, %c1_i32 : i32
    %6 = arith.addi %5, %arg1 : i32
    %c8_i32 = arith.constant 8 : i32
    %7 = arith.muli %6, %c8_i32 : i32
    %8 = tpu.iota {dimensions = array<i32: 0>} : vector<8x1xi32>
    %9 = vector.broadcast %7 : i32 to vector<8x1xi32>
    %10 = arith.addi %9, %8 : vector<8x1xi32>
    %c8_i32_2 = arith.constant 8 : i32
    %11 = vector.broadcast %c8_i32_2 : i32 to vector<8x1xi32>
    %12 = arith.cmpi slt, %10, %11 : vector<8x1xi32>
    %13 = arith.extui %12 : vector<8x1xi1> to vector<8x1xi32>
    %14 = arith.sitofp %13 : vector<8x1xi32> to vector<8x1xf32>
    %c16_i32 = arith.constant 16 : i32
    %15 = vector.broadcast %c16_i32 : i32 to vector<1x128xi32>
    %16 = arith.cmpi slt, %4, %15 : vector<1x128xi32>
    %cst = arith.constant -1.000000e+30 : f32
    %17 = vector.shape_cast %16 : vector<1x128xi1> to vector<1x128xi1>
    %18 = vector.broadcast %17 : vector<1x128xi1> to vector<8x128xi1>
    %19 = vector.broadcast %cst : f32 to vector<8x128xf32>
    %20 = arith.select %18, %3, %19 : vector<8x128xi1>, vector<8x128xf32>
    %cst_3 = arith.constant 6.250000e-03 : f32
    %cst_4 = arith.constant 0.000000e+00 : f32
    %21 = vector.broadcast %cst_3 : f32 to vector<1x128xf32>
    %22 = vector.broadcast %cst_4 : f32 to vector<1x128xf32>
    %23 = arith.select %16, %21, %22 : vector<1x128xi1>, vector<1x128xf32>
    %cst_5 = arith.constant dense<0xFF800000> : vector<8xf32>
    %24 = vector.multi_reduction <maximumf>, %20, %cst_5 [1] : vector<8x128xf32> to vector<8xf32>
    %25 = vector.shape_cast %24 : vector<8xf32> to vector<8x1xf32>
    %26 = vector.broadcast %25 : vector<8x1xf32> to vector<8x128xf32>
    %27 = arith.subf %20, %26 : vector<8x128xf32>
    %28 = math.exp %27 : vector<8x128xf32>
    %cst_6 = arith.constant dense<0.000000e+00> : vector<8xf32>
    %29 = vector.multi_reduction <add>, %28, %cst_6 [1] : vector<8x128xf32> to vector<8xf32>
    %30 = vector.shape_cast %29 : vector<8xf32> to vector<8x1xf32>
    %31 = math.log %30 : vector<8x1xf32>
    %32 = arith.addf %25, %31 : vector<8x1xf32>
    %c0_7 = arith.constant 0 : index
    %c0_8 = arith.constant 0 : index
    %33 = vector.load %arg3[%c0_7, %c0_8] : memref<8x1xi32, #tpu.memory_space<vmem>>, vector<8x1xi32>
    %34 = vector.broadcast %4 : vector<1x128xi32> to vector<8x128xi32>
    %35 = vector.broadcast %33 : vector<8x1xi32> to vector<8x128xi32>
    %36 = arith.cmpi eq, %34, %35 : vector<8x128xi32>
    %37 = arith.extui %36 : vector<8x128xi1> to vector<8x128xi32>
    %38 = arith.sitofp %37 : vector<8x128xi32> to vector<8x128xf32>
    %cst_9 = arith.constant 0.899999976 : f32
    %39 = vector.broadcast %cst_9 : f32 to vector<8x128xf32>
    %40 = arith.mulf %39, %38 : vector<8x128xf32>
    %41 = vector.broadcast %23 : vector<1x128xf32> to vector<8x128xf32>
    %42 = arith.addf %41, %40 : vector<8x128xf32>
    %43 = arith.mulf %3, %42 : vector<8x128xf32>
    %cst_10 = arith.constant dense<0.000000e+00> : vector<8xf32>
    %44 = vector.multi_reduction <add>, %43, %cst_10 [1] : vector<8x128xf32> to vector<8xf32>
    %45 = vector.shape_cast %44 : vector<8xf32> to vector<8x1xf32>
    %46 = arith.subf %32, %45 : vector<8x1xf32>
    %47 = arith.mulf %46, %14 : vector<8x1xf32>
    %48 = vector.shape_cast %47 : vector<8x1xf32> to vector<1x8x1xf32>
    %cst_11 = arith.constant dense<0.000000e+00> : vector<1xf32>
    %49 = vector.multi_reduction <add>, %48, %cst_11 [1, 2] : vector<1x8x1xf32> to vector<1xf32>
    %50 = vector.shape_cast %49 : vector<1xf32> to vector<1x1x1xf32>
    %51 = vector.extract %50[0, 0, 0] : f32 from vector<1x1x1xf32>
    %52 = vector.broadcast %51 : f32 to vector<1x1xf32>
    %cst_12 = arith.constant 1.250000e-01 : f32
    %53 = vector.broadcast %cst_12 : f32 to vector<1x1xf32>
    %54 = arith.mulf %52, %53 : vector<1x1xf32>
    %c0_13 = arith.constant 0 : index
    %c0_14 = arith.constant 0 : index
    %c0_15 = arith.constant 0 : index
    %55 = vector.load %arg4[%c0_13, %c0_14, %c0_15] : memref<1x1x1xf32, #tpu.memory_space<vmem>>, vector<1x1x1xf32>
    %56 = vector.shape_cast %54 : vector<1x1xf32> to vector<1x1x1xf32>
    %57 = arith.addf %55, %56 : vector<1x1x1xf32>
    %c0_16 = arith.constant 0 : index
    %c0_17 = arith.constant 0 : index
    %c0_18 = arith.constant 0 : index
    %58 = vector.load %arg4[%c0_16, %c0_17, %c0_18] : memref<1x1x1xf32, #tpu.memory_space<vmem>>, vector<1x1x1xf32>
    tpu.vector_store %arg4[%c0_16, %c0_17, %c0_18], %57 {strides = array<i32>} : memref<1x1x1xf32, #tpu.memory_space<vmem>>, vector<1x1x1xf32>,
    return
  }
  func.func @transform_0(%arg0: i32, %arg1: i32) -> (i32, i32) {
    %c1_i32 = arith.constant 1 : i32
    %0 = arith.muli %arg0, %c1_i32 : i32
    %1 = arith.addi %0, %arg1 : i32
    %c0_i32 = arith.constant 0 : i32
    %c0_i32_0 = arith.constant 0 : i32
    return %1, %c0_i32 : i32, i32
  }
  func.func @transform_1(%arg0: i32, %arg1: i32) -> (i32, i32) {
    %c1_i32 = arith.constant 1 : i32
    %0 = arith.muli %arg0, %c1_i32 : i32
    %1 = arith.addi %0, %arg1 : i32
    %c0_i32 = arith.constant 0 : i32
    %c0_i32_0 = arith.constant 0 : i32
    return %1, %c0_i32 : i32, i32
  }
  func.func @transform_2(%arg0: i32, %arg1: i32) -> (i32, i32, i32) {
    %c0_i32 = arith.constant 0 : i32
    %c0_i32_0 = arith.constant 0 : i32
    %c0_i32_1 = arith.constant 0 : i32
    return %arg0, %c0_i32, %c0_i32_0 : i32, i32, i32
  }
}

</mosaic_0001>

<llo_original>
// kernel: tpu_custom_call.1
$region0: #{tpu_custom_call.1}
  #allocation0 [shape = 'u32[]', space=smem, size = 0x4, offset = 0x4, fixed_abs, tag = 'smem constant byte address 0x4 - core index']
  #allocation1 [shape = 'u32[144,128]{1,0:T(1,128)}', space=vmem, size = 0x12000, scoped, tag = 'internal scratch']
  %s0 = inlined_call_operand.vmem [shape: f32[8,128], index: 0, kind: input, shape index: {}]
  %s1 = inlined_call_operand.vmem [shape: s32[8,1], index: 1, kind: input, shape index: {}]
  %s2 = inlined_call_operand.hbm [shape: f32[1,1,1], index: 2, kind: output, shape index: {}]
  %s3 = sld [smem:[#allocation0]]
  $region22: #{tpu_custom_call.1} parent=0
    _
  %s5 = ssub.s32 1, %s3
  %s6 = scalar_select 0, %s5, %s3
  $region1: #{tpu_custom_call.1} parent=0
    #allocation2 [shape = 'u8[512]{0}', space=vmem, size = 0x400, scoped, tag = 'output window, operand 0, single buffered']
    #allocation3 [shape = 's32[1]{0}', space=sflag, size = 0x4, scoped, tag = 'scoped memory for tpu_custom_call.1']
    %7 = vsyncpa [#allocation3], 0
    // Predicated region
    $region2: #{tpu_custom_call.1} parent=1 // pred_check
      _
    $region3: #{tpu_custom_call.1} parent=1 // pred_check_branch
      %9 = sbr.rel (0) target = $region5
    $region4: #{tpu_custom_call.1} parent=1 // pred_region
      %s10 = sadd.s32 0, 0
      %p11 = scmp.lt.s32.totalorder %s10, 0
      %s12 = scalar_select %p11, %s10, 0
      %s13 = smul.addr %s12, 8
      %s14 = scalar_lea.vmem %s0, %s13
      %s15 = sadd.s32 0, 0
    $region5: #{tpu_custom_call.1} parent=1 // pred_fallthru
      _
    // Predicated region
    $region6: #{tpu_custom_call.1} parent=1 // pred_check
      _
    $region7: #{tpu_custom_call.1} parent=1 // pred_check_branch
      %17 = sbr.rel (0) target = $region9
    $region8: #{tpu_custom_call.1} parent=1 // pred_region
      %s18 = sadd.s32 0, 0
      %p19 = scmp.lt.s32.totalorder %s18, 0
      %s20 = scalar_select %p19, %s18, 0
      %s21 = smul.addr %s20, 8
      %s22 = scalar_lea.vmem %s1, %s21
      %s23 = sadd.s32 0, 0
    $region9: #{tpu_custom_call.1} parent=1 // pred_fallthru
      _
    %s24 = sadd.s32 0, 0
    %p25 = scmp.lt.s32.totalorder %s24, 0
    %s26 = scalar_select %p25, %s24, 0
    %s27 = smul.addr %s26, 8
    %s28 = scalar_lea.vmem %s0, %s27
    %s29 = sadd.s32 0, 0
    %p30 = scmp.lt.s32.totalorder %s29, 0
    %s31 = scalar_select %p30, %s29, 0
    %s32 = smul.addr %s31, 8
    %s33 = scalar_lea.vmem %s1, %s32
    %s34 = sadd.s32 0, 0
    %p35 = scmp.lt.s32.totalorder %s34, 0
    %s36 = scalar_select %p35, %s34, 0
    %s37 = smul.addr %s36, 8
    %s38 = scalar_lea.vmem %s0, %s37
    %s39 = sadd.s32 0, 0
    %s40 = sadd.s32 0, 0
    %p41 = scmp.lt.s32.totalorder %s40, 0
    %s42 = scalar_select %p41, %s40, 0
    %s43 = smul.addr %s42, 8
    %s44 = scalar_lea.vmem %s1, %s43
    %s45 = sadd.s32 0, 0
    %p46 = scmp.eq.s32.totalorder 0, 0
    // Predicated region
    $region10: #{tpu_custom_call.1} parent=1 // pred_check
      %p47 = pneg %p46
    $region11: #{tpu_custom_call.1} parent=1 // pred_check_branch
      %49 = sbr.rel (%p47) target = $region13
    $region12: #{tpu_custom_call.1} parent=1 // pred_region
      %vm50 = vcmask 0
      %51 = vst.msk [vmem:[#allocation2] sm:$0x1] %vm50, 0.0
    $region13: #{tpu_custom_call.1} parent=1 // pred_fallthru
      _
    %v52 = vld [vmem:[%s38] sm:$0xff]
    %v53 = vlaneseq
    %v54 = vand.u32 %v53, 127
    %s55 = sadd.s32 0, 0
    %s56 = smul.u32 %s55, 8
    %v57 = vlaneseq
    %v58 = vshrl.u32 %v57, 7
    %v59 = vstv %s56
    %v60 = vadd.s32 %v59, %v58
    %vm61 = vcmp.lt.s32.totalorder %v60, 8
    %v62 = vsel %vm61, 1, 0
    %v63 = vcvt.s32.f32 %v62
    %vm64 = vcmp.lt.s32.totalorder %v54, 16
    %v65 = vsel %vm64, 1, 0
    %vm66 = vcmp.eq.s32.totalorder %v65, 1
    %v67 = vsel %vm66, %v52, -1e+30
    %v68 = vsel %vm64, 0.00625, 0.0
    %69 = vmax.xlane.f32.xlu0 %v67
    %v70 = vpop.xlane.xlu0 %69
    %v71 = vsub.f32 %v67, %v70
    %v72 = vmul.f32 %v71, 1.442695
    %v73 = vpow.pop %v72
    %74 = vadd.xlane.f32.xlu0 %v73
    %v75 = vpop.xlane.xlu0 %74
    %v76 = vlog2.pop %v75
    %v77 = vmul.f32 %v76, 0.6931472
    %v78 = vadd.f32 %v70, %v77
    %v79 = vld [vmem:[%s44] sm:$0xff]
    %80 = vset.pattern.permute.xlu0 0
    %81 = vperm.xlu0 %80, %v79
    %v82 = vpop.permute.xlu0 %81
    %vm83 = vcmp.eq.s32.totalorder %v54, %v82
    %v84 = vsel %vm83, 1, 0
    %v85 = vcvt.s32.f32 %v84
    %v86 = vmul.f32 %v85, 0.9
    %v87 = vadd.f32 %v68, %v86
    %v88 = vmul.f32 %v52, %v87
    %89 = vadd.xlane.f32.xlu0 %v88
    %v90 = vpop.xlane.xlu0 %89
    %v91 = vsub.f32 %v78, %v90
    %v92 = vmul.f32 %v91, %v63
    %vm93 = vcmask 7168
    %v94 = vsel %vm93, %v92, 0.0
    %95 = vadd.xlane.f32.xlu0 %v94
    %v96 = vpop.xlane.xlu0 %95
    %v97 = vrot.slane %v96, 4
    %v98 = vadd.f32 %v96, %v97
    %v99 = vrot.slane %v98, 2
    %v100 = vadd.f32 %v98, %v99
    %v101 = vrot.slane %v100, 1
    %v102 = vadd.f32 %v100, %v101
    %s103 = vtos %v102
    %v104 = vstv %s103
    %v105 = vmul.f32 %v104, 0.125
    %v106 = vld [vmem:[#allocation2] sm:$0x1]
    %v107 = vadd.f32 %v106, %v105
    %vm108 = vcmask 0
    %109 = vst.msk [vmem:[#allocation2] sm:$0x1] %vm108, %v107
    // Predicated region
    $region14: #{tpu_custom_call.1} parent=1 // pred_check
      _
    $region15: #{tpu_custom_call.1} parent=1 // pred_check_branch
      %111 = sbr.rel (0) target = $region17
    $region16: #{tpu_custom_call.1} parent=1 // pred_region
      %s113 = ssub.s32 16, 16
      %114 = vsyncadd [#allocation3], %s113
      %s116 = sshll.u32 [#allocation2], 4
      %s117 = int_to_ptr.vmem [resolvable:$true] %s116
      %119 = dma.vmem_to_hbm [thread:$0]  %s117, 16, %s2, [#allocation3]
    $region17: #{tpu_custom_call.1} parent=1 // pred_fallthru
      _
    // Predicated region
    $region18: #{tpu_custom_call.1} parent=1 // pred_check
      _
    $region19: #{tpu_custom_call.1} parent=1 // pred_check_branch
      %121 = sbr.rel (0) target = $region21
    $region20: #{tpu_custom_call.1} parent=1 // pred_region
      %122 = dma.done [#allocation3], 16
    $region21: #{tpu_custom_call.1} parent=1 // pred_fallthru
      _
    %123 = vsyncpa [#allocation3], 1

</llo_original>
